<compile_context>
chip_gen: v7x
topology: tpu7x:2x2x1
jax: 0.10.0
libtpu: 0.0.40
codegen_flags: <defaults>
</compile_context>

<pallas_src>
import functools

import jax
import jax.numpy as jnp
from jax.experimental import pallas as pl
from jax.experimental.pallas import tpu as pltpu


def _round_up(x, m):
    return ((x + m - 1) // m) * m


# ----------------------------------------------------------------------------
# Patch embedding kernel
# ----------------------------------------------------------------------------
def _patch_embed_kernel(p_ref, w_ref, b_ref, o_ref):
    # p_ref: (TM, Kp) bf16, w_ref: (Kp, Np) bf16, b_ref: (1, Np) f32,
    # o_ref: (TM, Np) out dtype.
    acc = jnp.dot(p_ref[...], w_ref[...], preferred_element_type=jnp.float32)
    o_ref[...] = (acc + b_ref[...]).astype(o_ref.dtype)


@functools.partial(
    jax.jit,
    static_argnames=("patch_size", "tile_m", "compute_dtype", "out_dtype"))
def patch_embed(x, weight, bias, patch_size, *, tile_m=512,
                compute_dtype=jnp.bfloat16, out_dtype=None):
    """x: (B, C, H, W); weight: (E, C, pH, pW); bias: (E,).

    Returns (B, num_patches, E), matching
    nn.Conv2d(C, E, patch, stride=patch)(x).flatten(2).transpose(1, 2).
    """
    if isinstance(patch_size, int):
        patch_size = (patch_size, patch_size)
    B, C, H, W = x.shape
    pH, pW = patch_size
    assert H % pH == 0 and W % pW == 0
    nH, nW = H // pH, W // pW
    num_patches = nH * nW
    E = weight.shape[0]
    K = C * pH * pW
    M = B * num_patches
    if out_dtype is None:
        out_dtype = x.dtype

    # ---- glue: extract non-overlapping patches, flatten in (c, ph, pw) order ----
    # Cast to bf16 first so the gather/transpose pass moves half the bytes.
    xp = x.astype(compute_dtype).reshape(B, C, nH, pH, nW, pW)
    xp = jnp.transpose(xp, (0, 2, 4, 1, 3, 5))            # (B, nH, nW, C, pH, pW)
    patches = xp.reshape(M, K)

    # Conv weight (E, C, pH, pW) -> (K, E) with matching (c, ph, pw) order.
    w_mat = weight.reshape(E, K).T.astype(compute_dtype)

    # ---- pad to lane/sublane-friendly shapes ----
    Kp = _round_up(K, 128)                 # lane-dense matmul contraction
    Np = _round_up(E, 128)                 # lane-dense output store (full vst)

    comp_sz = jnp.dtype(compute_dtype).itemsize
    out_sz = jnp.dtype(out_dtype).itemsize

    def vmem_need(tm):
        return (2 * tm * Kp * comp_sz      # patch tile, double-buffered
                + 2 * Kp * Np * comp_sz    # weight (conservative: 2 buffers)
                + 2 * Np * 4               # bias
                + 2 * tm * Np * out_sz)    # output tile, double-buffered

    TM = _round_up(min(tile_m, _round_up(M, 16)), 16)
    while TM > 16 and vmem_need(TM) > (48 << 20):   # stay well under v7x 64 MiB
        TM = max(16, TM // 2)
    Mp = _round_up(M, TM)

    patches_p = jnp.pad(patches, ((0, Mp - M), (0, Kp - K)))
    w_p = jnp.pad(w_mat, ((0, Kp - K), (0, Np - E)))
    b_p = jnp.pad(bias.astype(jnp.float32), (0, Np - E)).reshape(1, Np)

    vmem_limit = int(min(vmem_need(TM) + (4 << 20), 64 << 20))

    out = pl.pallas_call(
        _patch_embed_kernel,
        out_shape=jax.ShapeDtypeStruct((Mp, Np), out_dtype),
        grid_spec=pltpu.PrefetchScalarGridSpec(
            num_scalar_prefetch=0,
            grid=(Mp // TM,),
            in_specs=[
                pl.BlockSpec((TM, Kp), lambda i: (i, 0)),   # streaming patch tiles
                pl.BlockSpec((Kp, Np), lambda i: (0, 0)),   # VMEM-resident weight
                pl.BlockSpec((1, Np), lambda i: (0, 0)),    # VMEM-resident bias
            ],
            out_specs=pl.BlockSpec((TM, Np), lambda i: (i, 0)),
        ),
        compiler_params=pltpu.CompilerParams(
            # No cross-step reduction -> parallel (megacore sharding on v7x).
            dimension_semantics=("parallel",),
            vmem_limit_bytes=vmem_limit,
        ),
    )(patches_p, w_p, b_p)

    return out[:M, :E].reshape(B, num_patches, E)


def vit_embed_tokens(img, weight, bias, cls_token, patch_size):
    """VisionTransformer forward prefix: patch_embed + cls-token concat.

    TODO(synk): the external `transformer` module is unspecified and is not
    implemented; its output should be fed to `vit_norm_head` below.
    """
    B = img.shape[0]
    tok = patch_embed(img, weight, bias, patch_size)            # (B, P, E)
    cls = jnp.broadcast_to(cls_token, (B, 1, cls_token.shape[-1])).astype(tok.dtype)
    return jnp.concatenate([cls, tok], axis=1)                   # (B, P+1, E)


# ----------------------------------------------------------------------------
# Post-transformer epilogue:  head(norm(out.permute(1, 0, 2))[:, 0])
# Since only row 0 of the permuted tensor survives the slice, this reduces to
# LayerNorm + Linear on transformer_out[0]  (shape (B, D)).
# ----------------------------------------------------------------------------
def _norm_head_kernel(x_ref, g_ref, beta_ref, w_ref, hb_ref, o_ref, *, eps):
    x = x_ref[...].astype(jnp.float32)
    mean = jnp.mean(x, axis=-1, keepdims=True)
    xc = x - mean
    var = jnp.mean(xc * xc, axis=-1, keepdims=True)
    y = xc * jax.lax.rsqrt(var + eps)
    y = y * g_ref[...] + beta_ref[...]
    out = jnp.dot(y, w_ref[...], preferred_element_type=jnp.float32) + hb_ref[...]
    o_ref[...] = out.astype(o_ref.dtype)


@functools.partial(jax.jit, static_argnames=("eps",))
def vit_norm_head(x0, ln_weight, ln_bias, head_weight, head_bias, *, eps=1e-6):
    """x0: (B, D) = transformer_out[0];  head_weight: (num_classes, D) (torch layout).

    Returns (B, num_classes) = Linear(LayerNorm(x0)).
    Whole problem fits in VMEM (B small, D<=~1k), so a single grid-less call.
    """
    B, D = x0.shape
    NC = head_weight.shape[0]
    kernel = functools.partial(_norm_head_kernel, eps=eps)
    return pl.pallas_call(
        kernel,
        out_shape=jax.ShapeDtypeStruct((B, NC), jnp.float32),
    )(x0.astype(jnp.float32),
      ln_weight.astype(jnp.float32).reshape(1, D),
      ln_bias.astype(jnp.float32).reshape(1, D),
      head_weight.astype(jnp.float32).T,            # (D, NC)
      head_bias.astype(jnp.float32).reshape(1, NC))


# ----------------------------------------------------------------------------
# Pure-JAX references
# ----------------------------------------------------------------------------
def reference_patch_embed(x, weight, bias, patch_size):
    pH, pW = patch_size
    y = jax.lax.conv_general_dilated(
        x, weight, window_strides=(pH, pW), padding="VALID",
        dimension_numbers=("NCHW", "OIHW", "NCHW"))
    y = y + bias.reshape(1, -1, 1, 1)
    B, E, nH, nW = y.shape
    return jnp.transpose(y.reshape(B, E, nH * nW), (0, 2, 1))


def reference_norm_head(x0, ln_w, ln_b, head_w, head_b, eps=1e-6):
    mean = x0.mean(-1, keepdims=True)
    var = ((x0 - mean) ** 2).mean(-1, keepdims=True)
    y = (x0 - mean) / jnp.sqrt(var + eps) * ln_w + ln_b
    return y @ head_w.T + head_b


if __name__ == "__main__":
    # Small shapes: img_size=16, patch_size=4, in_chans=4, embed_dim=32, classes=16
    B, C, H, W = 2, 4, 16, 16
    patch = (4, 4)
    embed_dim = 32
    num_classes = 16

    key = jax.random.PRNGKey(0)
    kx, kw, kb, kt, klw, klb, khw, khb = jax.random.split(key, 8)
    x = jax.random.normal(kx, (B, C, H, W), dtype=jnp.float32)
    weight = jax.random.normal(kw, (embed_dim, C, patch[0], patch[1]),
                               dtype=jnp.float32) * 0.02
    bias = jax.random.normal(kb, (embed_dim,), dtype=jnp.float32) * 0.02
    cls_token = jnp.zeros((1, 1, embed_dim), dtype=jnp.float32)

    # --- patch embed ---
    out = jax.block_until_ready(patch_embed(x, weight, bias, patch))
    ref = jax.block_until_ready(reference_patch_embed(x, weight, bias, patch))
    num_patches = (H // patch[0]) * (W // patch[1])
    assert out.shape == (B, num_patches, embed_dim)
    # bf16 MXU operands -> looser tolerance than pure-f32.
    assert jnp.allclose(out, ref, atol=2e-2, rtol=2e-2), "patch_embed mismatch"

    # --- cls-token concat prefix ---
    tokens = jax.block_until_ready(
        vit_embed_tokens(x, weight, bias, cls_token, patch))
    assert tokens.shape == (B, num_patches + 1, embed_dim)

    # --- norm + head epilogue (on a stand-in for transformer_out[0]) ---
    # TODO(synk): the external `transformer` is unspecified; here its output row 0
    # is replaced by random data purely to exercise the norm/head kernel.
    x0 = jax.random.normal(kt, (B, embed_dim), dtype=jnp.float32)
    ln_w = 1.0 + 0.1 * jax.random.normal(klw, (embed_dim,), dtype=jnp.float32)
    ln_b = 0.1 * jax.random.normal(klb, (embed_dim,), dtype=jnp.float32)
    head_w = jax.random.normal(khw, (num_classes, embed_dim), dtype=jnp.float32) * 0.02
    head_b = jax.random.normal(khb, (num_classes,), dtype=jnp.float32) * 0.02

    logits = jax.block_until_ready(vit_norm_head(x0, ln_w, ln_b, head_w, head_b))
    logits_ref = jax.block_until_ready(
        reference_norm_head(x0, ln_w, ln_b, head_w, head_b))
    assert logits.shape == (B, num_classes)
    assert jnp.allclose(logits, logits_ref, atol=1e-4, rtol=1e-4), "norm_head mismatch"

    print("KERNEL_OK")
</pallas_src>

<mosaic_0001>
module attributes {stable_mosaic.version = 11 : i64} {
  func.func @_patch_embed_kernel(%arg0: i32, %arg1: memref<32x128xbf16, #tpu.memory_space<vmem>>, %arg2: memref<128x128xbf16, #tpu.memory_space<vmem>>, %arg3: memref<1x128xf32, #tpu.memory_space<vmem>>, %arg4: memref<32x128xf32, #tpu.memory_space<vmem>>) attributes {dimension_semantics = [#tpu.dimension_semantics<parallel>], iteration_bounds = array<i64: 1>, scalar_prefetch = 0 : i64, scratch_operands = 0 : i64, tpu.core_type = #tpu.core_type<tc>, window_params = [{transform_indices = @transform_0, window_bounds = array<i64: 32, 128>}, {pipeline_mode = #tpu.pipeline_mode<synchronous>, transform_indices = @transform_1, window_bounds = array<i64: 128, 128>}, {pipeline_mode = #tpu.pipeline_mode<synchronous>, transform_indices = @transform_2, window_bounds = array<i64: 1, 128>}, {transform_indices = @transform_3, window_bounds = array<i64: 32, 128>}]} {
    %c0 = arith.constant 0 : index
    %c0_0 = arith.constant 0 : index
    %0 = vector.load %arg1[%c0, %c0_0] : memref<32x128xbf16, #tpu.memory_space<vmem>>, vector<32x128xbf16>
    %c0_1 = arith.constant 0 : index
    %c0_2 = arith.constant 0 : index
    %1 = vector.load %arg2[%c0_1, %c0_2] : memref<128x128xbf16, #tpu.memory_space<vmem>>, vector<128x128xbf16>
    %cst = arith.constant dense<0.000000e+00> : vector<32x128xf32>
    %2 = tpu.matmul %0, %1, %cst {dimension_numbers = #tpu.dot_dimension_numbers<[1], [0], [0], [1], [0, 0, 1, 1], [], []>} : vector<32x128xbf16>, vector<128x128xbf16>, vector<32x128xf32> -> vector<32x128xf32>
    %c0_3 = arith.constant 0 : index
    %c0_4 = arith.constant 0 : index
    %3 = vector.load %arg3[%c0_3, %c0_4] : memref<1x128xf32, #tpu.memory_space<vmem>>, vector<1x128xf32>
    %4 = vector.broadcast %3 : vector<1x128xf32> to vector<32x128xf32>
    %5 = arith.addf %2, %4 : vector<32x128xf32>
    %c0_5 = arith.constant 0 : index
    %c0_6 = arith.constant 0 : index
    %6 = vector.load %arg4[%c0_5, %c0_6] : memref<32x128xf32, #tpu.memory_space<vmem>>, vector<32x128xf32>
    tpu.vector_store %arg4[%c0_5, %c0_6], %5 {strides = array<i32>} : memref<32x128xf32, #tpu.memory_space<vmem>>, vector<32x128xf32>,
    return
  }
  func.func @transform_0(%arg0: i32) -> (i32, i32) {
    %c0_i32 = arith.constant 0 : i32
    %c0_i32_0 = arith.constant 0 : i32
    return %arg0, %c0_i32 : i32, i32
  }
  func.func @transform_1(%arg0: i32) -> (i32, i32) {
    %c0_i32 = arith.constant 0 : i32
    %c0_i32_0 = arith.constant 0 : i32
    %c0_i32_1 = arith.constant 0 : i32
    return %c0_i32, %c0_i32_0 : i32, i32
  }
  func.func @transform_2(%arg0: i32) -> (i32, i32) {
    %c0_i32 = arith.constant 0 : i32
    %c0_i32_0 = arith.constant 0 : i32
    %c0_i32_1 = arith.constant 0 : i32
    return %c0_i32, %c0_i32_0 : i32, i32
  }
  func.func @transform_3(%arg0: i32) -> (i32, i32) {
    %c0_i32 = arith.constant 0 : i32
    %c0_i32_0 = arith.constant 0 : i32
    return %arg0, %c0_i32 : i32, i32
  }
}

</mosaic_0001>

<llo_original>
// kernel: patch_embed.1
$region0: #{patch_embed.1}
  #allocation0 [shape = 'u32[]', space=smem, size = 0x4, offset = 0x4, fixed_abs, tag = 'smem constant byte address 0x4 - core index']
  #allocation1 [shape = 'u32[144,128]{1,0:T(1,128)}', space=vmem, size = 0x12000, scoped, tag = 'internal scratch']
  %s0 = inlined_call_operand.vmem [shape: bf16[32,128], index: 0, kind: input, shape index: {}]
  %s1 = inlined_call_operand.vmem [shape: bf16[128,128], index: 1, kind: input, shape index: {}]
  %s2 = inlined_call_operand.vmem [shape: f32[1,128], index: 2, kind: input, shape index: {}]
  %s3 = inlined_call_operand.hbm [shape: f32[32,128], index: 3, kind: output, shape index: {}]
  %s4 = sld [smem:[#allocation0]]
  $region22: #{patch_embed.1} parent=0
    _
  %s6 = ssub.s32 1, %s4
  %s7 = scalar_select 0, %s6, %s4
  $region1: #{patch_embed.1} parent=0
    #allocation2 [shape = 'u8[16384]{0}', space=vmem, size = 0x4000, scoped, tag = 'output window, operand 0, single buffered']
    #allocation3 [shape = 's32[1]{0}', space=sflag, size = 0x4, scoped, tag = 'scoped memory for patch_embed.1']
    %8 = vsyncpa [#allocation3], 0
    // Predicated region
    $region2: #{patch_embed.1} parent=1 // pred_check
      _
    $region3: #{patch_embed.1} parent=1 // pred_check_branch
      %10 = sbr.rel (0) target = $region5
    $region4: #{patch_embed.1} parent=1 // pred_region
      _
    $region5: #{patch_embed.1} parent=1 // pred_fallthru
      _
    // Predicated region
    $region6: #{patch_embed.1} parent=1 // pred_check
      _
    $region7: #{patch_embed.1} parent=1 // pred_check_branch
      %12 = sbr.rel (0) target = $region9
    $region8: #{patch_embed.1} parent=1 // pred_region
      _
    $region9: #{patch_embed.1} parent=1 // pred_fallthru
      _
    // Predicated region
    $region10: #{patch_embed.1} parent=1 // pred_check
      _
    $region11: #{patch_embed.1} parent=1 // pred_check_branch
      %14 = sbr.rel (0) target = $region13
    $region12: #{patch_embed.1} parent=1 // pred_region
      _
    $region13: #{patch_embed.1} parent=1 // pred_fallthru
      _
    %v16 = vld [vmem:[%s0] sm:$0xf]
    %v17 = vld [vmem:[%s0 + $0x4] sm:$0xf]
    %v18 = vld [vmem:[%s0 + $0x8] sm:$0xf]
    %v19 = vld [vmem:[%s0 + $0xc] sm:$0xf]
    %v20 = vld [vmem:[%s1] sm:$0xf]
    %v21 = vld [vmem:[%s1 + $0x4] sm:$0xf]
    %v22 = vld [vmem:[%s1 + $0x8] sm:$0xf]
    %v23 = vld [vmem:[%s1 + $0xc] sm:$0xf]
    %v24 = vld [vmem:[%s1 + $0x10] sm:$0xf]
    %v25 = vld [vmem:[%s1 + $0x14] sm:$0xf]
    %v26 = vld [vmem:[%s1 + $0x18] sm:$0xf]
    %v27 = vld [vmem:[%s1 + $0x1c] sm:$0xf]
    %v28 = vld [vmem:[%s1 + $0x20] sm:$0xf]
    %v29 = vld [vmem:[%s1 + $0x24] sm:$0xf]
    %v30 = vld [vmem:[%s1 + $0x28] sm:$0xf]
    %v31 = vld [vmem:[%s1 + $0x2c] sm:$0xf]
    %v32 = vld [vmem:[%s1 + $0x30] sm:$0xf]
    %v33 = vld [vmem:[%s1 + $0x34] sm:$0xf]
    %v34 = vld [vmem:[%s1 + $0x38] sm:$0xf]
    %v35 = vld [vmem:[%s1 + $0x3c] sm:$0xf]
    %v36 = vld [vmem:[%s2] sm:$0x1]
    %v38 = vlaneseq
    %v39 = vshrl.u32 %v38, 7
    %v40 = vsub.s32 0, %v39
    %v41 = vrot.slane %v36, %v40
    %v47 = vunpack.c.l.b16 %v16
    %v48 = vunpack.c.l.b16 %v17
    %v49 = vunpack.c.l.b16 %v18
    %v50 = vunpack.c.l.b16 %v19
    %v51 = vpack.c.b16 %v48, %v47
    %v52 = vpack.c.b16 %v50, %v49
    %v71 = vunpack.c.l.b16 %v20
    %v72 = vunpack.c.l.b16 %v21
    %v73 = vunpack.c.l.b16 %v22
    %v74 = vunpack.c.l.b16 %v23
    %v75 = vunpack.c.l.b16 %v24
    %v76 = vunpack.c.l.b16 %v25
    %v77 = vunpack.c.l.b16 %v26
    %v78 = vunpack.c.l.b16 %v27
    %v79 = vunpack.c.l.b16 %v28
    %v80 = vunpack.c.l.b16 %v29
    %v81 = vunpack.c.l.b16 %v30
    %v82 = vunpack.c.l.b16 %v31
    %v83 = vunpack.c.l.b16 %v32
    %v84 = vunpack.c.l.b16 %v33
    %v85 = vunpack.c.l.b16 %v34
    %v86 = vunpack.c.l.b16 %v35
    %v87 = vpack.c.b16 %v72, %v71
    %v88 = vpack.c.b16 %v74, %v73
    %v89 = vpack.c.b16 %v76, %v75
    %v90 = vpack.c.b16 %v78, %v77
    %v91 = vpack.c.b16 %v80, %v79
    %v92 = vpack.c.b16 %v82, %v81
    %v93 = vpack.c.b16 %v84, %v83
    %v94 = vpack.c.b16 %v86, %v85
    %103 = vmatprep.subr.bf16.mxu0 0
    %104 = vmatpush1.bf16.msra.mxu0 %v87
    %105 = vmatprep.subr.bf16.mxu0 0
    %106 = vmatpush1.bf16.msra.mxu0 %v88
    %107 = vmatprep.subr.bf16.mxu0 0
    %108 = vmatpush1.bf16.msra.mxu0 %v89
    %109 = vmatprep.subr.bf16.mxu0 0
    %110 = vmatpush1.bf16.msra.mxu0 %v90
    %111 = vmatprep.subr.bf16.mxu0 0
    %112 = vmatpush1.bf16.msra.mxu0 %v91
    %113 = vmatprep.subr.bf16.mxu0 0
    %114 = vmatpush1.bf16.msra.mxu0 %v92
    %115 = vmatprep.subr.bf16.mxu0 0
    %116 = vmatpush1.bf16.msra.mxu0 %v93
    %117 = vmatprep.subr.bf16.mxu0 0
    %118 = vmatpush1.bf16.msra.mxu0 %v94
    %119 = vmatprep.subr.bf16.mxu0 0
    %120 = vmatpush1.bf16.msra.mxu0 0
    %121 = vmatprep.subr.bf16.mxu0 0
    %122 = vmatpush1.bf16.msra.mxu0 0
    %123 = vmatprep.subr.bf16.mxu0 0
    %124 = vmatpush1.bf16.msra.mxu0 0
    %125 = vmatprep.subr.bf16.mxu0 0
    %126 = vmatpush1.bf16.msra.mxu0 0
    %127 = vmatprep.subr.bf16.mxu0 0
    %128 = vmatpush1.bf16.msra.mxu0 0
    %129 = vmatprep.subr.bf16.mxu0 0
    %130 = vmatpush1.bf16.msra.mxu0 0
    %131 = vmatprep.subr.bf16.mxu0 0
    %132 = vmatpush1.bf16.msra.mxu0 0
    %133 = vmatprep.subr.bf16.mxu0 0
    %134 = vmatpush1.bf16.msra.mxu0 0
    %135 = vmatprep.mubr.bf16.mxu0 0
    %136 = vmatmul.mubr.bf16.gmra.mrb[0].mxu0 %v51
    %v137 = vpop.f32.mrb[0].mxu0
    %v138 = vadd.f32 %v41, %v137
    %v139 = vpop.f32.mrb[0].mxu0
    %v140 = vpop.f32.mrb[0].mxu0
    %v141 = vadd.f32 %v41, %v140
    %v142 = vpop.f32.mrb[0].mxu0
    %143 = vmatprep.mubr.bf16.mxu0 0
    %144 = vmatmul.mubr.bf16.gmra.mrb[0].mxu0 %v52
    %v145 = vpop.f32.mrb[0].mxu0
    %v146 = vadd.f32 %v41, %v145
    %v147 = vpop.f32.mrb[0].mxu0
    %v148 = vpop.f32.mrb[0].mxu0
    %v149 = vadd.f32 %v41, %v148
    %v150 = vpop.f32.mrb[0].mxu0
    %151 = vdwg.mxu0
    %152 = vst [vmem:[#allocation2] sm:$0xff] %v138
    %153 = vst [vmem:[#allocation2 + $0x8] sm:$0xff] %v141
    %154 = vst [vmem:[#allocation2 + $0x10] sm:$0xff] %v146
    %155 = vst [vmem:[#allocation2 + $0x18] sm:$0xff] %v149
    // Predicated region
    $region14: #{patch_embed.1} parent=1 // pred_check
      _
    $region15: #{patch_embed.1} parent=1 // pred_check_branch
      %157 = sbr.rel (0) target = $region17
    $region16: #{patch_embed.1} parent=1 // pred_region
      %s159 = ssub.s32 512, 512
      %160 = vsyncadd [#allocation3], %s159
      %s161 = sshll.u32 [#allocation2], 4
      %s162 = int_to_ptr.vmem [resolvable:$true] %s161
      %167 = dma.vmem_to_hbm [thread:$0]  %s162, 512, %s3, [#allocation3], 128, 128, 8
    $region17: #{patch_embed.1} parent=1 // pred_fallthru
      _
    // Predicated region
    $region18: #{patch_embed.1} parent=1 // pred_check
      _
    $region19: #{patch_embed.1} parent=1 // pred_check_branch
      %169 = sbr.rel (0) target = $region21
    $region20: #{patch_embed.1} parent=1 // pred_region
      %170 = dma.done [#allocation3], 512
    $region21: #{patch_embed.1} parent=1 // pred_fallthru
      _
    %171 = vsyncpa [#allocation3], 1

</llo_original>
